<compile_context>
chip_gen: v6e
topology: v6e:2x2x1
jax: 0.10.0
libtpu: 0.0.40
codegen_flags: <defaults>
</compile_context>

<pallas_src>
import jax
import jax.numpy as jnp
from jax.experimental import pallas as pl
from jax.experimental.pallas import tpu as pltpu

SUBLANE = 8
ALIGN = 256  # v6e/v7x MXUs are 2x256x256; 256-aligned K/H/N keeps each MXU
             # pass full (128-odd dims leave half idle).  Harmless on v5e.


def _round_up(x, m):
    return ((x + m - 1) // m) * m


def _pad2(a, rows, cols):
    pr, pc = rows - a.shape[0], cols - a.shape[1]
    if pr or pc:
        a = jnp.pad(a, ((0, pr), (0, pc)))
    return a


def _vmem_capacity_bytes():
    """Physical per-core VMEM (128 MiB v5e/v6e, 64 MiB v7x); safe fallback."""
    try:
        cap = int(pltpu.get_tpu_info().vmem_capacity_bytes)
        if cap > 0:
            return cap
    except Exception:
        pass
    return 64 << 20  # conservative default valid on every listed generation


def _make_kernel(n_hc, h_chunk, use_scratch):
    """Fused MLP kernel.  bf16 MXU inputs, f32 accumulation.  The hidden dim is
    processed in `n_hc` static chunks of `h_chunk` columns so the f32/bf16
    intermediate never exceeds (tile_b, h_chunk)."""

    if not use_scratch:
        def kernel(x_ref, w1_ref, b1_ref, w2_ref, b2_ref, o_ref):
            x = x_ref[...].astype(jnp.bfloat16)          # on-chip cast (VPU)
            h = jnp.dot(x, w1_ref[...], preferred_element_type=jnp.float32)
            h = jnp.maximum(h + b1_ref[...], 0.0)        # bias + ReLU in f32
            # Dropout(p): eval-mode => identity (inference semantics).
            y = jnp.dot(h.astype(jnp.bfloat16), w2_ref[...],
                        preferred_element_type=jnp.float32)
            o_ref[...] = (y + b2_ref[...]).astype(o_ref.dtype)
        return kernel

    def kernel(x_ref, w1_ref, b1_ref, w2_ref, b2_ref, o_ref, acc_ref):
        x = x_ref[...].astype(jnp.bfloat16)
        acc_ref[...] = jnp.zeros_like(acc_ref)
        for c in range(n_hc):                            # static unrolled loop
            lo = c * h_chunk
            h = jnp.dot(x, w1_ref[:, lo:lo + h_chunk],
                        preferred_element_type=jnp.float32)
            h = jnp.maximum(h + b1_ref[:, lo:lo + h_chunk], 0.0)
            # Dropout(p): eval-mode => identity.
            acc_ref[...] += jnp.dot(h.astype(jnp.bfloat16),
                                    w2_ref[lo:lo + h_chunk, :],
                                    preferred_element_type=jnp.float32)
        o_ref[...] = (acc_ref[...] + b2_ref[...]).astype(o_ref.dtype)
    return kernel


def _mlp_forward(x, w1_p, b1_p, w2_p, b2_p, *, cfg):
    (D_in, D_out, Kp, Hp, Np_eff, tile_b_cap, tile_n, n_hc, h_chunk,
     use_scratch, vmem_limit, odt_name) = cfg
    assert x.ndim == 2 and x.shape[1] == D_in
    B = x.shape[0]
    odt = x.dtype if odt_name is None else jnp.dtype(odt_name)

    # Batch tile: biggest (<= cap) that does not over-pad small batches.
    tile_b = max(SUBLANE, min(tile_b_cap, _round_up(B, SUBLANE)))
    Bp = _round_up(B, tile_b)
    nb, nn = Bp // tile_b, Np_eff // tile_n

    # Pad batch/K only; x stays in its input dtype (bf16 cast happens inside
    # the kernel, so no separate wrapper-side pad+cast HBM pass).
    x_p = _pad2(x, Bp, Kp)

    # Constant-index operands: single-buffered (double-buffering buys nothing).
    resident = dict(pipeline_mode=pl.Buffered(1))
    if nn == 1:
        w2_spec = pl.BlockSpec((Hp, tile_n), lambda i, j: (0, 0), **resident)
        b2_spec = pl.BlockSpec((1, tile_n), lambda i, j: (0, 0), **resident)
    else:  # stream W2 column blocks (and matching output blocks) over axis j
        w2_spec = pl.BlockSpec((Hp, tile_n), lambda i, j: (0, j))
        b2_spec = pl.BlockSpec((1, tile_n), lambda i, j: (0, j))

    flops = 2 * Bp * (Kp * Hp * nn + Hp * Np_eff)
    bytes_accessed = int(x_p.size * x_p.dtype.itemsize
                         + w1_p.size * 2 + w2_p.size * 2
                         + (Hp + Np_eff) * 4
                         + Bp * Np_eff * jnp.dtype(odt).itemsize)

    out_p = pl.pallas_call(
        _make_kernel(n_hc, h_chunk, use_scratch),
        out_shape=jax.ShapeDtypeStruct((Bp, Np_eff), odt),
        grid=(nb, nn),
        in_specs=[
            pl.BlockSpec((tile_b, Kp), lambda i, j: (i, 0)),          # x (streamed)
            pl.BlockSpec((Kp, Hp), lambda i, j: (0, 0), **resident),  # W1
            pl.BlockSpec((1, Hp), lambda i, j: (0, 0), **resident),   # b1
            w2_spec,                                                  # W2
            b2_spec,                                                  # b2
        ],
        out_specs=pl.BlockSpec((tile_b, tile_n), lambda i, j: (i, j)),
        scratch_shapes=(tuple([pltpu.VMEM((tile_b, tile_n), jnp.float32)])
                        if use_scratch else ()),
        compiler_params=pltpu.CompilerParams(
            # Batch axis "parallel" so v7x's two TensorCores split it (each
            # core keeps its own resident weight copy); N axis is sequential.
            dimension_semantics=("parallel", "arbitrary"),
            vmem_limit_bytes=vmem_limit,
        ),
        cost_estimate=pl.CostEstimate(flops=flops, transcendentals=0,
                                      bytes_accessed=bytes_accessed),
    )(x_p, w1_p, b1_p, w2_p, b2_p)

    return out_p[:B, :D_out]


def make_mlp(w1, b1, w2, b2, *, dropout_prob=0.5, tile_b=512,
             out_dtype=None, force_tile_n=None):
    """Builds a fused Pallas MLP forward: relu(x @ w1 + b1) @ w2 + b2.

    Weights use the x@W convention ([in, out]); transpose PyTorch nn.Linear
    weights ([out, in]) before calling.  Dropout uses eval-mode semantics.
    Weight pad/cast happens ONCE here (hoisted out of the per-call path).
    """
    del dropout_prob  # eval-mode dropout == identity
    D_in, H = w1.shape
    H2, D_out = w2.shape
    assert H2 == H and b1.shape == (H,) and b2.shape == (D_out,)

    Kp = _round_up(D_in, ALIGN)
    Hp = _round_up(H, ALIGN)
    Np = _round_up(D_out, ALIGN)

    # Hidden-dim chunking inside the kernel (bounds the f32 intermediate).
    h_chunk = 512 if (Hp >= 512 and Hp % 512 == 0) else ALIGN
    h_chunk = min(h_chunk, Hp)
    n_hc = Hp // h_chunk
    use_scratch = n_hc > 1

    tile_b_cap = max(SUBLANE, _round_up(tile_b, SUBLANE))

    # ---- generation-aware VMEM budgeting (no blind 64 MiB clamp) ----------
    vmem_cap = _vmem_capacity_bytes()
    ceiling = (vmem_cap * 7) // 8          # never request more than 7/8 physical
    budget = ceiling - (8 << 20)           # headroom for compiler scratch

    def footprint(tb, tn, n_tiles):
        w2_bufs = 1 if n_tiles == 1 else 2
        f = (2 * tb * Kp * 4                      # x tiles (f32, double-buffered)
             + 2 * tb * tn * 4                    # out tiles (double-buffered)
             + Kp * Hp * 2 + SUBLANE * Hp * 4     # resident W1 + b1 (1 buffer)
             + w2_bufs * (Hp * tn * 2 + SUBLANE * tn * 4)   # W2/b2 blocks
             + 2 * tb * h_chunk * 4)              # in-flight h chunk (f32+bf16)
        if use_scratch:
            f += tb * tn * 4                      # f32 accumulator scratch
        return f

    # Prefer W2 fully resident; otherwise stream W2 column blocks over a
    # second grid axis (real tiling so it also fits v7x's 64 MiB VMEM).
    tile_n = Np
    while tile_n > ALIGN and footprint(tile_b_cap, tile_n,
                                       pl.cdiv(Np, tile_n)) > budget:
        tile_n = max(ALIGN, _round_up(tile_n // 2, ALIGN))
    if force_tile_n is not None:                  # test hook
        tile_n = max(ALIGN, _round_up(force_tile_n, ALIGN))
    Np_eff = _round_up(Np, tile_n)                # zero-padded, sliced off later
    nn = Np_eff // tile_n
    # TODO(synk): if W1 alone (Kp*Hp bf16) cannot fit in VMEM, a reduction grid
    #             axis over K with pl.when init/finalize would be needed.

    fp = footprint(tile_b_cap, tile_n, nn)
    vmem_limit = int(min(ceiling, max(fp + (8 << 20), 32 << 20)))

    # ---- pad & cast weights ONCE -------------------------------------------
    w1_p = _pad2(jnp.asarray(w1), Kp, Hp).astype(jnp.bfloat16)
    w2_p = _pad2(jnp.asarray(w2), Hp, Np_eff).astype(jnp.bfloat16)
    b1_p = _pad2(jnp.reshape(jnp.asarray(b1), (1, -1)), 1, Hp).astype(jnp.float32)
    b2_p = _pad2(jnp.reshape(jnp.asarray(b2), (1, -1)), 1, Np_eff).astype(jnp.float32)

    odt_name = None if out_dtype is None else jnp.dtype(out_dtype).name
    cfg = (D_in, D_out, Kp, Hp, Np_eff, tile_b_cap, tile_n, n_hc, h_chunk,
           use_scratch, vmem_limit, odt_name)

    jitted = jax.jit(_mlp_forward, static_argnames=("cfg",))

    def forward(x):
        return jitted(x, w1_p, b1_p, w2_p, b2_p, cfg=cfg)

    return forward


def _reference_checks(out, x, w1, b1, w2, b2, f32_atol, f32_rtol):
    # Reference #1: same bf16-input / f32-accumulate recipe as the kernel.
    h = jnp.dot(x.astype(jnp.bfloat16), w1.astype(jnp.bfloat16),
                preferred_element_type=jnp.float32) + b1[None, :]
    h = jnp.maximum(h, 0.0)
    ref_bf16 = jnp.dot(h.astype(jnp.bfloat16), w2.astype(jnp.bfloat16),
                       preferred_element_type=jnp.float32) + b2[None, :]
    assert jnp.allclose(out, ref_bf16, atol=2e-2, rtol=2e-2)
    # Reference #2: full-f32 math (eval-mode dropout = identity).
    ref_f32 = jnp.maximum(x @ w1 + b1[None, :], 0.0) @ w2 + b2[None, :]
    assert jnp.allclose(out, ref_f32, atol=f32_atol, rtol=f32_rtol)


if __name__ == "__main__":
    key = jax.random.PRNGKey(0)

    # ---- Config 1: small shapes matching the module (single-chunk path) ----
    batch, input_size, hidden_size, output_size = 8, 32, 64, 16
    kx, kw1, kb1, kw2, kb2 = jax.random.split(key, 5)
    x = jax.random.normal(kx, (batch, input_size), dtype=jnp.float32)
    # PyTorch Linear weight is [out, in]; stored here as [in, out] so x @ W.
    w1 = jax.random.normal(kw1, (input_size, hidden_size), jnp.float32) * 0.1
    b1 = jax.random.normal(kb1, (hidden_size,), jnp.float32) * 0.1
    w2 = jax.random.normal(kw2, (hidden_size, output_size), jnp.float32) * 0.1
    b2 = jax.random.normal(kb2, (output_size,), jnp.float32) * 0.1

    mlp = make_mlp(w1, b1, w2, b2)
    out = jax.block_until_ready(mlp(x))
    assert out.shape == (batch, output_size)
    _reference_checks(out, x, w1, b1, w2, b2, f32_atol=5e-2, f32_rtol=5e-2)

    # ---- Config 2: exercises hidden-chunk accumulator + streamed-W2 path ----
    batch2, in2, hid2, out2 = 20, 32, 600, 300
    k2 = jax.random.split(jax.random.PRNGKey(1), 5)
    x2 = jax.random.normal(k2[0], (batch2, in2), jnp.float32)
    w1b = jax.random.normal(k2[1], (in2, hid2), jnp.float32) * 0.1
    b1b = jax.random.normal(k2[2], (hid2,), jnp.float32) * 0.1
    w2b = jax.random.normal(k2[3], (hid2, out2), jnp.float32) * 0.1
    b2b = jax.random.normal(k2[4], (out2,), jnp.float32) * 0.1

    mlp2 = make_mlp(w1b, b1b, w2b, b2b, force_tile_n=256)  # force N tiling path
    o2 = jax.block_until_ready(mlp2(x2))
    assert o2.shape == (batch2, out2)
    _reference_checks(o2, x2, w1b, b1b, w2b, b2b, f32_atol=1e-1, f32_rtol=1e-1)

    print("KERNEL_OK")
</pallas_src>

<mosaic_0001>
module attributes {stable_mosaic.version = 11 : i64} {
  func.func @kernel(%arg0: i32, %arg1: i32, %arg2: memref<8x256xf32, #tpu.memory_space<vmem>>, %arg3: memref<256x256xbf16, #tpu.memory_space<vmem>>, %arg4: memref<1x256xf32, #tpu.memory_space<vmem>>, %arg5: memref<256x256xbf16, #tpu.memory_space<vmem>>, %arg6: memref<1x256xf32, #tpu.memory_space<vmem>>, %arg7: memref<8x256xf32, #tpu.memory_space<vmem>>) attributes {dimension_semantics = [#tpu.dimension_semantics<parallel>, #tpu.dimension_semantics<arbitrary>], iteration_bounds = array<i64: 1, 1>, scalar_prefetch = 0 : i64, scratch_operands = 0 : i64, tpu.core_type = #tpu.core_type<tc>, window_params = [{transform_indices = @transform_0, window_bounds = array<i64: 8, 256>}, {pipeline_mode = #tpu.pipeline_mode<synchronous>, transform_indices = @transform_1, window_bounds = array<i64: 256, 256>}, {pipeline_mode = #tpu.pipeline_mode<synchronous>, transform_indices = @transform_2, window_bounds = array<i64: 1, 256>}, {pipeline_mode = #tpu.pipeline_mode<synchronous>, transform_indices = @transform_3, window_bounds = array<i64: 256, 256>}, {pipeline_mode = #tpu.pipeline_mode<synchronous>, transform_indices = @transform_4, window_bounds = array<i64: 1, 256>}, {transform_indices = @transform_5, window_bounds = array<i64: 8, 256>}]} {
    %c0 = arith.constant 0 : index
    %c0_0 = arith.constant 0 : index
    %0 = vector.load %arg2[%c0, %c0_0] : memref<8x256xf32, #tpu.memory_space<vmem>>, vector<8x256xf32>
    %1 = arith.truncf %0 : vector<8x256xf32> to vector<8x256xbf16>
    %c0_1 = arith.constant 0 : index
    %c0_2 = arith.constant 0 : index
    %2 = vector.load %arg3[%c0_1, %c0_2] : memref<256x256xbf16, #tpu.memory_space<vmem>>, vector<256x256xbf16>
    %cst = arith.constant dense<0.000000e+00> : vector<8x256xf32>
    %3 = tpu.matmul %1, %2, %cst {dimension_numbers = #tpu.dot_dimension_numbers<[1], [0], [0], [1], [0, 0, 1, 1], [], []>} : vector<8x256xbf16>, vector<256x256xbf16>, vector<8x256xf32> -> vector<8x256xf32>
    %c0_3 = arith.constant 0 : index
    %c0_4 = arith.constant 0 : index
    %4 = vector.load %arg4[%c0_3, %c0_4] : memref<1x256xf32, #tpu.memory_space<vmem>>, vector<1x256xf32>
    %5 = vector.broadcast %4 : vector<1x256xf32> to vector<8x256xf32>
    %6 = arith.addf %3, %5 : vector<8x256xf32>
    %cst_5 = arith.constant 0.000000e+00 : f32
    %7 = vector.broadcast %cst_5 : f32 to vector<8x256xf32>
    %8 = arith.maximumf %6, %7 : vector<8x256xf32>
    %9 = arith.truncf %8 : vector<8x256xf32> to vector<8x256xbf16>
    %c0_6 = arith.constant 0 : index
    %c0_7 = arith.constant 0 : index
    %10 = vector.load %arg5[%c0_6, %c0_7] : memref<256x256xbf16, #tpu.memory_space<vmem>>, vector<256x256xbf16>
    %cst_8 = arith.constant dense<0.000000e+00> : vector<8x256xf32>
    %11 = tpu.matmul %9, %10, %cst_8 {dimension_numbers = #tpu.dot_dimension_numbers<[1], [0], [0], [1], [0, 0, 1, 1], [], []>} : vector<8x256xbf16>, vector<256x256xbf16>, vector<8x256xf32> -> vector<8x256xf32>
    %c0_9 = arith.constant 0 : index
    %c0_10 = arith.constant 0 : index
    %12 = vector.load %arg6[%c0_9, %c0_10] : memref<1x256xf32, #tpu.memory_space<vmem>>, vector<1x256xf32>
    %13 = vector.broadcast %12 : vector<1x256xf32> to vector<8x256xf32>
    %14 = arith.addf %11, %13 : vector<8x256xf32>
    %c0_11 = arith.constant 0 : index
    %c0_12 = arith.constant 0 : index
    %15 = vector.load %arg7[%c0_11, %c0_12] : memref<8x256xf32, #tpu.memory_space<vmem>>, vector<8x256xf32>
    tpu.vector_store %arg7[%c0_11, %c0_12], %14 {strides = array<i32>} : memref<8x256xf32, #tpu.memory_space<vmem>>, vector<8x256xf32>,
    return
  }
  func.func @transform_0(%arg0: i32, %arg1: i32) -> (i32, i32) {
    %c0_i32 = arith.constant 0 : i32
    %c0_i32_0 = arith.constant 0 : i32
    return %arg0, %c0_i32 : i32, i32
  }
  func.func @transform_1(%arg0: i32, %arg1: i32) -> (i32, i32) {
    %c0_i32 = arith.constant 0 : i32
    %c0_i32_0 = arith.constant 0 : i32
    %c0_i32_1 = arith.constant 0 : i32
    return %c0_i32, %c0_i32_0 : i32, i32
  }
  func.func @transform_2(%arg0: i32, %arg1: i32) -> (i32, i32) {
    %c0_i32 = arith.constant 0 : i32
    %c0_i32_0 = arith.constant 0 : i32
    %c0_i32_1 = arith.constant 0 : i32
    return %c0_i32, %c0_i32_0 : i32, i32
  }
  func.func @transform_3(%arg0: i32, %arg1: i32) -> (i32, i32) {
    %c0_i32 = arith.constant 0 : i32
    %c0_i32_0 = arith.constant 0 : i32
    %c0_i32_1 = arith.constant 0 : i32
    return %c0_i32, %c0_i32_0 : i32, i32
  }
  func.func @transform_4(%arg0: i32, %arg1: i32) -> (i32, i32) {
    %c0_i32 = arith.constant 0 : i32
    %c0_i32_0 = arith.constant 0 : i32
    %c0_i32_1 = arith.constant 0 : i32
    return %c0_i32, %c0_i32_0 : i32, i32
  }
  func.func @transform_5(%arg0: i32, %arg1: i32) -> (i32, i32) {
    %c0_i32 = arith.constant 0 : i32
    return %arg0, %arg1 : i32, i32
  }
}

</mosaic_0001>

<llo_original>
// kernel: _mlp_forward.1
$region0: #{_mlp_forward.1}
  #allocation0 [shape = 'u32[]', space=smem, size = 0x4, offset = 0x4, fixed_abs, tag = 'smem constant byte address 0x4 - core index']
  #allocation1 [shape = 'u32[144,128]{1,0:T(1,128)}', space=vmem, size = 0x12000, scoped, tag = 'internal scratch']
  %s0 = inlined_call_operand.vmem [shape: f32[8,256], index: 0, kind: input, shape index: {}]
  %s1 = inlined_call_operand.hbm [shape: bf16[256,256], index: 1, kind: input, shape index: {}]
  %s2 = inlined_call_operand.vmem [shape: f32[1,256], index: 2, kind: input, shape index: {}]
  %s3 = inlined_call_operand.hbm [shape: bf16[256,256], index: 3, kind: input, shape index: {}]
  %s4 = inlined_call_operand.vmem [shape: f32[1,256], index: 4, kind: input, shape index: {}]
  %s5 = inlined_call_operand.vmem [shape: f32[8,256], index: 5, kind: output, shape index: {}]
  %s6 = sld [smem:[#allocation0]]
  $region38: #{_mlp_forward.1} parent=0
    _
  %s8 = ssub.s32 1, %s6
  %s9 = scalar_select 0, %s8, %s6
  $region1: #{_mlp_forward.1} parent=0
    #allocation2 [shape = 'u8[131072]{0}', space=vmem, size = 0x20000, scoped, tag = 'input window, operand 1, single buffered']
    #allocation3 [shape = 's32[1]{0}', space=sflag, size = 0x4, scoped, tag = 'scoped memory for _mlp_forward.1']
    #allocation4 [shape = 'u8[131072]{0}', space=vmem, size = 0x20000, scoped, tag = 'input window, operand 3, single buffered']
    #allocation5 [shape = 's32[1]{0}', space=sflag, size = 0x4, scoped, tag = 'scoped memory for _mlp_forward.1']
    %10 = vsyncpa [#allocation3], 0
    %11 = vsyncpa [#allocation5], 0
    // Predicated region
    $region2: #{_mlp_forward.1} parent=1 // pred_check
      _
    $region3: #{_mlp_forward.1} parent=1 // pred_check_branch
      %13 = sbr.rel (0) target = $region5
    $region4: #{_mlp_forward.1} parent=1 // pred_region
      _
    $region5: #{_mlp_forward.1} parent=1 // pred_fallthru
      _
    // Predicated region
    $region6: #{_mlp_forward.1} parent=1 // pred_check
      _
    $region7: #{_mlp_forward.1} parent=1 // pred_check_branch
      %15 = sbr.rel (0) target = $region9
    $region8: #{_mlp_forward.1} parent=1 // pred_region
      %s17 = ssub.s32 4096, 4096
      %18 = vsyncadd [#allocation3], %s17
      %s19 = sshll.u32 [#allocation2], 4
      %s20 = int_to_ptr.vmem [resolvable:$true] %s19
      %25 = dma.hbm_to_vmem [thread:$0]  %s1, 4096, %s20, [#allocation3], 128, 128, 8
    $region9: #{_mlp_forward.1} parent=1 // pred_fallthru
      _
    // Predicated region
    $region10: #{_mlp_forward.1} parent=1 // pred_check
      _
    $region11: #{_mlp_forward.1} parent=1 // pred_check_branch
      %27 = sbr.rel (0) target = $region13
    $region12: #{_mlp_forward.1} parent=1 // pred_region
      _
    $region13: #{_mlp_forward.1} parent=1 // pred_fallthru
      _
    // Predicated region
    $region14: #{_mlp_forward.1} parent=1 // pred_check
      _
    $region15: #{_mlp_forward.1} parent=1 // pred_check_branch
      %29 = sbr.rel (0) target = $region17
    $region16: #{_mlp_forward.1} parent=1 // pred_region
      %s31 = ssub.s32 4096, 4096
      %32 = vsyncadd [#allocation5], %s31
      %s33 = sshll.u32 [#allocation4], 4
      %s34 = int_to_ptr.vmem [resolvable:$true] %s33
      %39 = dma.hbm_to_vmem [thread:$0]  %s3, 4096, %s34, [#allocation5], 128, 128, 8
    $region17: #{_mlp_forward.1} parent=1 // pred_fallthru
      _
    // Predicated region
    $region18: #{_mlp_forward.1} parent=1 // pred_check
      _
    $region19: #{_mlp_forward.1} parent=1 // pred_check_branch
      %41 = sbr.rel (0) target = $region21
    $region20: #{_mlp_forward.1} parent=1 // pred_region
      _
    $region21: #{_mlp_forward.1} parent=1 // pred_fallthru
      _
    // Predicated region
    $region22: #{_mlp_forward.1} parent=1 // pred_check
      _
    $region23: #{_mlp_forward.1} parent=1 // pred_check_branch
      %43 = sbr.rel (0) target = $region25
    $region24: #{_mlp_forward.1} parent=1 // pred_region
      %44 = dma.done [#allocation3], 4096
    $region25: #{_mlp_forward.1} parent=1 // pred_fallthru
      _
    // Predicated region
    $region26: #{_mlp_forward.1} parent=1 // pred_check
      _
    $region27: #{_mlp_forward.1} parent=1 // pred_check_branch
      %46 = sbr.rel (0) target = $region29
    $region28: #{_mlp_forward.1} parent=1 // pred_region
      %47 = dma.done [#allocation5], 4096
    $region29: #{_mlp_forward.1} parent=1 // pred_fallthru
      _
    %v48 = vld [vmem:[%s0] sm:$0xff]
    %v49 = vld [vmem:[%s0 + $0x8] sm:$0xff]
    %v50 = vpack.c.bf16 %v48, %v48
    %v51 = vpack.c.bf16 %v49, %v49
    %v52 = vld [vmem:[#allocation2] sm:$0xff]
    %v53 = vld [vmem:[#allocation2 + $0x8] sm:$0xff]
    %v54 = vld [vmem:[#allocation2 + $0x10] sm:$0xff]
    %v55 = vld [vmem:[#allocation2 + $0x18] sm:$0xff]
    %v56 = vld [vmem:[#allocation2 + $0x20] sm:$0xff]
    %v57 = vld [vmem:[#allocation2 + $0x28] sm:$0xff]
    %v58 = vld [vmem:[#allocation2 + $0x30] sm:$0xff]
    %v59 = vld [vmem:[#allocation2 + $0x38] sm:$0xff]
    %v60 = vld [vmem:[#allocation2 + $0x40] sm:$0xff]
    %v61 = vld [vmem:[#allocation2 + $0x48] sm:$0xff]
    %v62 = vld [vmem:[#allocation2 + $0x50] sm:$0xff]
    %v63 = vld [vmem:[#allocation2 + $0x58] sm:$0xff]
    %v64 = vld [vmem:[#allocation2 + $0x60] sm:$0xff]
    %v65 = vld [vmem:[#allocation2 + $0x68] sm:$0xff]
    %v66 = vld [vmem:[#allocation2 + $0x70] sm:$0xff]
    %v67 = vld [vmem:[#allocation2 + $0x78] sm:$0xff]
    %v68 = vld [vmem:[#allocation2 + $0x80] sm:$0xff]
    %v69 = vld [vmem:[#allocation2 + $0x88] sm:$0xff]
    %v70 = vld [vmem:[#allocation2 + $0x90] sm:$0xff]
    %v71 = vld [vmem:[#allocation2 + $0x98] sm:$0xff]
    %v72 = vld [vmem:[#allocation2 + $0xa0] sm:$0xff]
    %v73 = vld [vmem:[#allocation2 + $0xa8] sm:$0xff]
    %v74 = vld [vmem:[#allocation2 + $0xb0] sm:$0xff]
    %v75 = vld [vmem:[#allocation2 + $0xb8] sm:$0xff]
    %v76 = vld [vmem:[#allocation2 + $0xc0] sm:$0xff]
    %v77 = vld [vmem:[#allocation2 + $0xc8] sm:$0xff]
    %v78 = vld [vmem:[#allocation2 + $0xd0] sm:$0xff]
    %v79 = vld [vmem:[#allocation2 + $0xd8] sm:$0xff]
    %v80 = vld [vmem:[#allocation2 + $0xe0] sm:$0xff]
    %v81 = vld [vmem:[#allocation2 + $0xe8] sm:$0xff]
    %v82 = vld [vmem:[#allocation2 + $0xf0] sm:$0xff]
    %v83 = vld [vmem:[#allocation2 + $0xf8] sm:$0xff]
    %v84 = vld [vmem:[%s2] sm:$0x3]
    %v86 = vlaneseq
    %v87 = vshrl.u32 %v86, 7
    %v88 = vsub.s32 0, %v87
    %v89 = vrot.slane %v84, %v88
    %v90 = vlaneseq
    %v91 = vshrl.u32 %v90, 7
    %v92 = vsub.s32 1, %v91
    %v93 = vrot.slane %v84, %v92
    %v128 = vunpack.c.l.b16 %v52
    %v129 = vunpack.c.h.b16 %v52
    %v130 = vunpack.c.l.b16 %v53
    %v131 = vunpack.c.h.b16 %v53
    %v132 = vunpack.c.l.b16 %v54
    %v133 = vunpack.c.h.b16 %v54
    %v134 = vunpack.c.l.b16 %v55
    %v135 = vunpack.c.h.b16 %v55
    %v136 = vunpack.c.l.b16 %v56
    %v137 = vunpack.c.h.b16 %v56
    %v138 = vunpack.c.l.b16 %v57
    %v139 = vunpack.c.h.b16 %v57
    %v140 = vunpack.c.l.b16 %v58
    %v141 = vunpack.c.h.b16 %v58
    %v142 = vunpack.c.l.b16 %v59
    %v143 = vunpack.c.h.b16 %v59
    %v144 = vunpack.c.l.b16 %v60
    %v145 = vunpack.c.h.b16 %v60
    %v146 = vunpack.c.l.b16 %v61
    %v147 = vunpack.c.h.b16 %v61
    %v148 = vunpack.c.l.b16 %v62
    %v149 = vunpack.c.h.b16 %v62
    %v150 = vunpack.c.l.b16 %v63
    %v151 = vunpack.c.h.b16 %v63
    %v152 = vunpack.c.l.b16 %v64
    %v153 = vunpack.c.h.b16 %v64
    %v154 = vunpack.c.l.b16 %v65
    %v155 = vunpack.c.h.b16 %v65
    %v156 = vunpack.c.l.b16 %v66
    %v157 = vunpack.c.h.b16 %v66
    %v158 = vunpack.c.l.b16 %v67
    %v159 = vunpack.c.h.b16 %v67
    %v160 = vunpack.c.l.b16 %v68
    %v161 = vunpack.c.h.b16 %v68
    %v162 = vunpack.c.l.b16 %v69
    %v163 = vunpack.c.h.b16 %v69
    %v164 = vunpack.c.l.b16 %v70
    %v165 = vunpack.c.h.b16 %v70
    %v166 = vunpack.c.l.b16 %v71
    %v167 = vunpack.c.h.b16 %v71
    %v168 = vunpack.c.l.b16 %v72
    %v169 = vunpack.c.h.b16 %v72
    %v170 = vunpack.c.l.b16 %v73
    %v171 = vunpack.c.h.b16 %v73
    %v172 = vunpack.c.l.b16 %v74
    %v173 = vunpack.c.h.b16 %v74
    %v174 = vunpack.c.l.b16 %v75
    %v175 = vunpack.c.h.b16 %v75
    %v176 = vunpack.c.l.b16 %v76
    %v177 = vunpack.c.h.b16 %v76
    %v178 = vunpack.c.l.b16 %v77
    %v179 = vunpack.c.h.b16 %v77
    %v180 = vunpack.c.l.b16 %v78
    %v181 = vunpack.c.h.b16 %v78
    %v182 = vunpack.c.l.b16 %v79
    %v183 = vunpack.c.h.b16 %v79
    %v184 = vunpack.c.l.b16 %v80
    %v185 = vunpack.c.h.b16 %v80
    %v186 = vunpack.c.l.b16 %v81
    %v187 = vunpack.c.h.b16 %v81
    %v188 = vunpack.c.l.b16 %v82
    %v189 = vunpack.c.h.b16 %v82
    %v190 = vunpack.c.l.b16 %v83
    %v191 = vunpack.c.h.b16 %v83
    %v192 = vpack.c.b16 %v130, %v128
    %v193 = vpack.c.b16 %v131, %v129
    %v194 = vpack.c.b16 %v134, %v132
    %v195 = vpack.c.b16 %v135, %v133
    %v196 = vpack.c.b16 %v138, %v136
    %v197 = vpack.c.b16 %v139, %v137
    %v198 = vpack.c.b16 %v142, %v140
    %v199 = vpack.c.b16 %v143, %v141
    %v200 = vpack.c.b16 %v146, %v144
    %v201 = vpack.c.b16 %v147, %v145
    %v202 = vpack.c.b16 %v150, %v148
    %v203 = vpack.c.b16 %v151, %v149
    %v204 = vpack.c.b16 %v154, %v152
    %v205 = vpack.c.b16 %v155, %v153
    %v206 = vpack.c.b16 %v158, %v156
    %v207 = vpack.c.b16 %v159, %v157
    %v208 = vpack.c.b16 %v162, %v160
    %v209 = vpack.c.b16 %v163, %v161
    %v210 = vpack.c.b16 %v166, %v164
    %v211 = vpack.c.b16 %v167, %v165
    %v212 = vpack.c.b16 %v170, %v168
    %v213 = vpack.c.b16 %v171, %v169
    %v214 = vpack.c.b16 %v174, %v172
    %v215 = vpack.c.b16 %v175, %v173
    %v216 = vpack.c.b16 %v178, %v176
    %v217 = vpack.c.b16 %v179, %v177
    %v218 = vpack.c.b16 %v182, %v180
    %v219 = vpack.c.b16 %v183, %v181
    %v220 = vpack.c.b16 %v186, %v184
    %v221 = vpack.c.b16 %v187, %v185
    %v222 = vpack.c.b16 %v190, %v188
    %v223 = vpack.c.b16 %v191, %v189
    %256 = vmatprep.subr.bf16.mxu0 %v207
    %257 = vmatpush1.bf16.msra.mxu0 %v206
    %258 = vmatprep.subr.bf16.mxu0 %v205
    %259 = vmatpush1.bf16.msra.mxu0 %v204
    %260 = vmatprep.subr.bf16.mxu0 %v203
    %261 = vmatpush1.bf16.msra.mxu0 %v202
    %262 = vmatprep.subr.bf16.mxu0 %v201
    %263 = vmatpush1.bf16.msra.mxu0 %v200
    %264 = vmatprep.subr.bf16.mxu0 %v199
    %265 = vmatpush1.bf16.msra.mxu0 %v198
    %266 = vmatprep.subr.bf16.mxu0 %v197
    %267 = vmatpush1.bf16.msra.mxu0 %v196
    %268 = vmatprep.subr.bf16.mxu0 %v195
    %269 = vmatpush1.bf16.msra.mxu0 %v194
    %270 = vmatprep.subr.bf16.mxu0 %v193
    %271 = vmatpush1.bf16.msra.mxu0 %v192
    %272 = vmatprep.subr.bf16.mxu0 %v223
    %273 = vmatpush2.bf16.msra.mxu0 %v222
    %274 = vmatprep.subr.bf16.mxu0 %v221
    %275 = vmatpush2.bf16.msra.mxu0 %v220
    %276 = vmatprep.subr.bf16.mxu0 %v219
    %277 = vmatpush2.bf16.msra.mxu0 %v218
    %278 = vmatprep.subr.bf16.mxu0 %v217
    %279 = vmatpush2.bf16.msra.mxu0 %v216
    %280 = vmatprep.subr.bf16.mxu0 %v215
    %281 = vmatpush2.bf16.msra.mxu0 %v214
    %282 = vmatprep.subr.bf16.mxu0 %v213
    %283 = vmatpush2.bf16.msra.mxu0 %v212
    %284 = vmatprep.subr.bf16.mxu0 %v211
    %285 = vmatpush2.bf16.msra.mxu0 %v210
    %286 = vmatprep.subr.bf16.mxu0 %v209
    %287 = vmatpush2.bf16.msra.mxu0 %v208
    %288 = vmatprep.mubr.bf16.mxu0 %v51
    %289 = vmatmul.mubr.bf16.gmra.mxu0 %v50
    %v290 = vpop.f32.mrf.mxu0
    %v291 = vadd.f32 %v89, %v290
    %v292 = vpop.f32.mrf.mxu0
    %v293 = vadd.f32 %v93, %v292
    %v294 = vpop.f32.mrf.mxu0
    %v295 = vpop.f32.mrf.mxu0
    %296 = vdwg.mxu0
    %v297 = vmax.f32 %v291, 0.0
    %v298 = vmax.f32 %v293, 0.0
    %v299 = vpack.c.bf16 %v297, %v297
    %v300 = vpack.c.bf16 %v298, %v298
    %v301 = vld [vmem:[#allocation4] sm:$0xff]
    %v302 = vld [vmem:[#allocation4 + $0x8] sm:$0xff]
    %v303 = vld [vmem:[#allocation4 + $0x10] sm:$0xff]
    %v304 = vld [vmem:[#allocation4 + $0x18] sm:$0xff]
    %v305 = vld [vmem:[#allocation4 + $0x20] sm:$0xff]
    %v306 = vld [vmem:[#allocation4 + $0x28] sm:$0xff]
    %v307 = vld [vmem:[#allocation4 + $0x30] sm:$0xff]
    %v308 = vld [vmem:[#allocation4 + $0x38] sm:$0xff]
    %v309 = vld [vmem:[#allocation4 + $0x40] sm:$0xff]
    %v310 = vld [vmem:[#allocation4 + $0x48] sm:$0xff]
    %v311 = vld [vmem:[#allocation4 + $0x50] sm:$0xff]
    %v312 = vld [vmem:[#allocation4 + $0x58] sm:$0xff]
    %v313 = vld [vmem:[#allocation4 + $0x60] sm:$0xff]
    %v314 = vld [vmem:[#allocation4 + $0x68] sm:$0xff]
    %v315 = vld [vmem:[#allocation4 + $0x70] sm:$0xff]
    %v316 = vld [vmem:[#allocation4 + $0x78] sm:$0xff]
    %v317 = vld [vmem:[#allocation4 + $0x80] sm:$0xff]
    %v318 = vld [vmem:[#allocation4 + $0x88] sm:$0xff]
    %v319 = vld [vmem:[#allocation4 + $0x90] sm:$0xff]
    %v320 = vld [vmem:[#allocation4 + $0x98] sm:$0xff]
    %v321 = vld [vmem:[#allocation4 + $0xa0] sm:$0xff]
    %v322 = vld [vmem:[#allocation4 + $0xa8] sm:$0xff]
    %v323 = vld [vmem:[#allocation4 + $0xb0] sm:$0xff]
    %v324 = vld [vmem:[#allocation4 + $0xb8] sm:$0xff]
    %v325 = vld [vmem:[#allocation4 + $0xc0] sm:$0xff]
    %v326 = vld [vmem:[#allocation4 + $0xc8] sm:$0xff]
    %v327 = vld [vmem:[#allocation4 + $0xd0] sm:$0xff]
    %v328 = vld [vmem:[#allocation4 + $0xd8] sm:$0xff]
    %v329 = vld [vmem:[#allocation4 + $0xe0] sm:$0xff]
    %v330 = vld [vmem:[#allocation4 + $0xe8] sm:$0xff]
    %v331 = vld [vmem:[#allocation4 + $0xf0] sm:$0xff]
    %v332 = vld [vmem:[#allocation4 + $0xf8] sm:$0xff]
    %v333 = vld [vmem:[%s4] sm:$0x3]
    %v335 = vlaneseq
    %v336 = vshrl.u32 %v335, 7
    %v337 = vsub.s32 0, %v336
    %v338 = vrot.slane %v333, %v337
    %v339 = vlaneseq
    %v340 = vshrl.u32 %v339, 7
    %v341 = vsub.s32 1, %v340
    %v342 = vrot.slane %v333, %v341
    %v377 = vunpack.c.l.b16 %v301
    %v378 = vunpack.c.h.b16 %v301
    %v379 = vunpack.c.l.b16 %v302
    %v380 = vunpack.c.h.b16 %v302
    %v381 = vunpack.c.l.b16 %v303
    %v382 = vunpack.c.h.b16 %v303
    %v383 = vunpack.c.l.b16 %v304
    %v384 = vunpack.c.h.b16 %v304
    %v385 = vunpack.c.l.b16 %v305
    %v386 = vunpack.c.h.b16 %v305
    %v387 = vunpack.c.l.b16 %v306
    %v388 = vunpack.c.h.b16 %v306
    %v389 = vunpack.c.l.b16 %v307
    %v390 = vunpack.c.h.b16 %v307
    %v391 = vunpack.c.l.b16 %v308
    %v392 = vunpack.c.h.b16 %v308
    %v393 = vunpack.c.l.b16 %v309
    %v394 = vunpack.c.h.b16 %v309
    %v395 = vunpack.c.l.b16 %v310
    %v396 = vunpack.c.h.b16 %v310
    %v397 = vunpack.c.l.b16 %v311
    %v398 = vunpack.c.h.b16 %v311
    %v399 = vunpack.c.l.b16 %v312
    %v400 = vunpack.c.h.b16 %v312
    %v401 = vunpack.c.l.b16 %v313
    %v402 = vunpack.c.h.b16 %v313
    %v403 = vunpack.c.l.b16 %v314
    %v404 = vunpack.c.h.b16 %v314
    %v405 = vunpack.c.l.b16 %v315
    %v406 = vunpack.c.h.b16 %v315
    %v407 = vunpack.c.l.b16 %v316
    %v408 = vunpack.c.h.b16 %v316
    %v409 = vunpack.c.l.b16 %v317
    %v410 = vunpack.c.h.b16 %v317
    %v411 = vunpack.c.l.b16 %v318
    %v412 = vunpack.c.h.b16 %v318
    %v413 = vunpack.c.l.b16 %v319
    %v414 = vunpack.c.h.b16 %v319
    %v415 = vunpack.c.l.b16 %v320
    %v416 = vunpack.c.h.b16 %v320
    %v417 = vunpack.c.l.b16 %v321
    %v418 = vunpack.c.h.b16 %v321
    %v419 = vunpack.c.l.b16 %v322
    %v420 = vunpack.c.h.b16 %v322
    %v421 = vunpack.c.l.b16 %v323
    %v422 = vunpack.c.h.b16 %v323
    %v423 = vunpack.c.l.b16 %v324
    %v424 = vunpack.c.h.b16 %v324
    %v425 = vunpack.c.l.b16 %v325
    %v426 = vunpack.c.h.b16 %v325
    %v427 = vunpack.c.l.b16 %v326
    %v428 = vunpack.c.h.b16 %v326
    %v429 = vunpack.c.l.b16 %v327
    %v430 = vunpack.c.h.b16 %v327
    %v431 = vunpack.c.l.b16 %v328
    %v432 = vunpack.c.h.b16 %v328
    %v433 = vunpack.c.l.b16 %v329
    %v434 = vunpack.c.h.b16 %v329
    %v435 = vunpack.c.l.b16 %v330
    %v436 = vunpack.c.h.b16 %v330
    %v437 = vunpack.c.l.b16 %v331
    %v438 = vunpack.c.h.b16 %v331
    %v439 = vunpack.c.l.b16 %v332
    %v440 = vunpack.c.h.b16 %v332
    %v441 = vpack.c.b16 %v379, %v377
    %v442 = vpack.c.b16 %v380, %v378
    %v443 = vpack.c.b16 %v383, %v381
    %v444 = vpack.c.b16 %v384, %v382
    %v445 = vpack.c.b16 %v387, %v385
    %v446 = vpack.c.b16 %v388, %v386
    %v447 = vpack.c.b16 %v391, %v389
    %v448 = vpack.c.b16 %v392, %v390
    %v449 = vpack.c.b16 %v395, %v393
    %v450 = vpack.c.b16 %v396, %v394
    %v451 = vpack.c.b16 %v399, %v397
    %v452 = vpack.c.b16 %v400, %v398
    %v453 = vpack.c.b16 %v403, %v401
    %v454 = vpack.c.b16 %v404, %v402
    %v455 = vpack.c.b16 %v407, %v405
    %v456 = vpack.c.b16 %v408, %v406
    %v457 = vpack.c.b16 %v411, %v409
    %v458 = vpack.c.b16 %v412, %v410
    %v459 = vpack.c.b16 %v415, %v413
    %v460 = vpack.c.b16 %v416, %v414
    %v461 = vpack.c.b16 %v419, %v417
    %v462 = vpack.c.b16 %v420, %v418
    %v463 = vpack.c.b16 %v423, %v421
    %v464 = vpack.c.b16 %v424, %v422
    %v465 = vpack.c.b16 %v427, %v425
    %v466 = vpack.c.b16 %v428, %v426
    %v467 = vpack.c.b16 %v431, %v429
    %v468 = vpack.c.b16 %v432, %v430
    %v469 = vpack.c.b16 %v435, %v433
    %v470 = vpack.c.b16 %v436, %v434
    %v471 = vpack.c.b16 %v439, %v437
    %v472 = vpack.c.b16 %v440, %v438
    %505 = vmatprep.subr.bf16.mxu0 %v456
    %506 = vmatpush1.bf16.msra.mxu0 %v455
    %507 = vmatprep.subr.bf16.mxu0 %v454
    %508 = vmatpush1.bf16.msra.mxu0 %v453
    %509 = vmatprep.subr.bf16.mxu0 %v452
    %510 = vmatpush1.bf16.msra.mxu0 %v451
    %511 = vmatprep.subr.bf16.mxu0 %v450
    %512 = vmatpush1.bf16.msra.mxu0 %v449
    %513 = vmatprep.subr.bf16.mxu0 %v448
    %514 = vmatpush1.bf16.msra.mxu0 %v447
    %515 = vmatprep.subr.bf16.mxu0 %v446
    %516 = vmatpush1.bf16.msra.mxu0 %v445
    %517 = vmatprep.subr.bf16.mxu0 %v444
    %518 = vmatpush1.bf16.msra.mxu0 %v443
    %519 = vmatprep.subr.bf16.mxu0 %v442
    %520 = vmatpush1.bf16.msra.mxu0 %v441
    %521 = vmatprep.subr.bf16.mxu0 %v472
    %522 = vmatpush2.bf16.msra.mxu0 %v471
    %523 = vmatprep.subr.bf16.mxu0 %v470
    %524 = vmatpush2.bf16.msra.mxu0 %v469
    %525 = vmatprep.subr.bf16.mxu0 %v468
    %526 = vmatpush2.bf16.msra.mxu0 %v467
    %527 = vmatprep.subr.bf16.mxu0 %v466
    %528 = vmatpush2.bf16.msra.mxu0 %v465
    %529 = vmatprep.subr.bf16.mxu0 %v464
    %530 = vmatpush2.bf16.msra.mxu0 %v463
    %531 = vmatprep.subr.bf16.mxu0 %v462
    %532 = vmatpush2.bf16.msra.mxu0 %v461
    %533 = vmatprep.subr.bf16.mxu0 %v460
    %534 = vmatpush2.bf16.msra.mxu0 %v459
    %535 = vmatprep.subr.bf16.mxu0 %v458
    %536 = vmatpush2.bf16.msra.mxu0 %v457
    %537 = vmatprep.mubr.bf16.mxu0 %v300
    %538 = vmatmul.mubr.bf16.gmra.mxu0 %v299
    %v539 = vpop.f32.mrf.mxu0
    %v540 = vadd.f32 %v338, %v539
    %v541 = vpop.f32.mrf.mxu0
    %v542 = vadd.f32 %v342, %v541
    %v543 = vpop.f32.mrf.mxu0
    %v544 = vpop.f32.mrf.mxu0
    %545 = vdwg.mxu0
    %546 = vst [vmem:[%s5] sm:$0xff] %v540
    %547 = vst [vmem:[%s5 + $0x8] sm:$0xff] %v542
    // Predicated region
    $region30: #{_mlp_forward.1} parent=1 // pred_check
      _
    $region31: #{_mlp_forward.1} parent=1 // pred_check_branch
      %549 = sbr.rel (0) target = $region33
    $region32: #{_mlp_forward.1} parent=1 // pred_region
      _
    $region33: #{_mlp_forward.1} parent=1 // pred_fallthru
      _
    // Predicated region
    $region34: #{_mlp_forward.1} parent=1 // pred_check
      _
    $region35: #{_mlp_forward.1} parent=1 // pred_check_branch
      %551 = sbr.rel (0) target = $region37
    $region36: #{_mlp_forward.1} parent=1 // pred_region
      _
    $region37: #{_mlp_forward.1} parent=1 // pred_fallthru
      _
    %552 = vsyncpa [#allocation3], 1
    %553 = vsyncpa [#allocation5], 1

</llo_original>
